<compile_context>
chip_gen: v5e
topology: v5e:2x2
jax: 0.10.0
libtpu: 0.0.40
codegen_flags: <defaults>
</compile_context>

<pallas_src>
import functools

import jax
import jax.numpy as jnp
from jax.experimental import pallas as pl
from jax.experimental.pallas import tpu as pltpu

NO_FEATURES = 28 * 28   # 784, flattened MNIST image
H1 = 160
H2 = 40
NO_CLASSES = 10

# Lane-padded contraction sizes used inside the kernel (zero-padded, math unchanged).
H1_PAD = 256            # 160 -> clean 128-lane tiles
H2_PAD = 128            # 40  -> 1 clean 128-lane tile

DEFAULT_B_TILE = 2048   # big tile amortizes per-step overhead; ~13 MiB x-DMA
                        # double-buffered at f32 -> well under 48 MiB VMEM.


def _round_up(n, m):
    return pl.cdiv(n, m) * m


def _mlp_kernel(x_ref, w1_ref, b1_ref, w2_ref, b2_ref, w3_ref, b3_ref, o_ref):
    # x tile arrives as f32 straight from HBM; cast to bf16 in-kernel (VPU),
    # all three matmuls accumulate in fp32 on the MXU.
    x = x_ref[...].astype(jnp.bfloat16)

    h1 = jnp.dot(x, w1_ref[...], preferred_element_type=jnp.float32) + b1_ref[...]
    h1 = jnp.maximum(h1, 0.0).astype(jnp.bfloat16)            # relu

    h2 = jnp.dot(h1, w2_ref[...], preferred_element_type=jnp.float32) + b2_ref[...]
    h2 = jnp.maximum(h2, 0.0).astype(jnp.bfloat16)            # relu

    logits = jnp.dot(h2, w3_ref[...], preferred_element_type=jnp.float32) + b3_ref[...]
    o_ref[...] = jax.nn.sigmoid(logits)                        # (bt, 10) f32 out


def prepare_params(params):
    """Zero-pad the fp32 (in, out) params on the contraction dims; weights -> bf16.

    Done once, outside the per-forward path (weights are tiny and reused).
    """
    w1, b1, w2, b2, w3, b3 = params

    def pad2(a, rows, cols):
        return jnp.pad(a, ((0, rows - a.shape[0]), (0, cols - a.shape[1])))

    w1p = pad2(w1, NO_FEATURES, H1_PAD).astype(jnp.bfloat16)
    b1p = pad2(b1, 1, H1_PAD).astype(jnp.float32)
    w2p = pad2(w2, H1_PAD, H2_PAD).astype(jnp.bfloat16)
    b2p = pad2(b2, 1, H2_PAD).astype(jnp.float32)
    w3p = pad2(w3, H2_PAD, NO_CLASSES).astype(jnp.bfloat16)   # keep 10 output cols
    b3p = b3.astype(jnp.float32)                               # (1, 10)
    return (w1p, b1p, w2p, b2p, w3p, b3p)


@functools.partial(jax.jit, static_argnames=("b_tile",))
def mnist_net_forward(x, padded_params, *, b_tile=DEFAULT_B_TILE):
    """x: (B, 784) float32.  Returns (B, 10) float32 sigmoid outputs."""
    w1, b1, w2, b2, w3, b3 = padded_params
    B = x.shape[0]

    # Batch tile: multiple of 8 sublanes; capped at ceil(B/2) (rounded to 8) so the
    # grid has >=2 balanced steps for v7x megacore whenever the batch allows it.
    bt = _round_up(max(int(b_tile), 1), 8)
    bt = min(bt, _round_up(pl.cdiv(B, 2), 8))
    if bt >= B:
        bt = B            # single block == full batch dim -> always a legal BlockSpec
    grid = (pl.cdiv(B, bt),)   # ragged last block handled by Pallas (no batch padding)

    const = lambda shape: pl.BlockSpec(shape, lambda i: tuple(0 for _ in shape))

    out = pl.pallas_call(
        _mlp_kernel,
        out_shape=jax.ShapeDtypeStruct((B, NO_CLASSES), jnp.float32),
        grid=grid,
        in_specs=[
            pl.BlockSpec((bt, NO_FEATURES), lambda i: (i, 0)),   # x tile, pipelined
            const(w1.shape), const(b1.shape),                    # VMEM-resident params
            const(w2.shape), const(b2.shape),
            const(w3.shape), const(b3.shape),
        ],
        out_specs=pl.BlockSpec((bt, NO_CLASSES), lambda i: (i, 0)),
        compiler_params=pltpu.CompilerParams(
            dimension_semantics=("parallel",),    # shard batch steps across TCs (v7x)
            vmem_limit_bytes=48 << 20,            # <=48 MiB: safe on v7x (64 MiB/TC)
        ),
    )(x, w1, b1, w2, b2, w3, b3)

    return out


def init_params(key):
    """Deterministic synthetic parameters matching nn.Linear shapes ((in, out) layout)."""
    ks = jax.random.split(key, 6)

    def linear(kw, kb, fan_in, fan_out):
        bound = 1.0 / jnp.sqrt(fan_in)
        w = jax.random.uniform(kw, (fan_in, fan_out), jnp.float32, -bound, bound)
        b = jax.random.uniform(kb, (1, fan_out), jnp.float32, -bound, bound)
        return w, b

    w1, b1 = linear(ks[0], ks[1], NO_FEATURES, H1)
    w2, b2 = linear(ks[2], ks[3], H1, H2)
    w3, b3 = linear(ks[4], ks[5], H2, NO_CLASSES)
    return (w1, b1, w2, b2, w3, b3)


def _reference_bf16(x, params):
    """Same arithmetic as the kernel (bf16 matmul inputs, fp32 accumulation), unpadded."""
    w1, b1, w2, b2, w3, b3 = params
    xb = x.astype(jnp.bfloat16)
    h1 = jnp.dot(xb, w1.astype(jnp.bfloat16), preferred_element_type=jnp.float32) + b1
    h1 = jnp.maximum(h1, 0.0).astype(jnp.bfloat16)
    h2 = jnp.dot(h1, w2.astype(jnp.bfloat16), preferred_element_type=jnp.float32) + b2
    h2 = jnp.maximum(h2, 0.0).astype(jnp.bfloat16)
    logits = jnp.dot(h2, w3.astype(jnp.bfloat16), preferred_element_type=jnp.float32) + b3
    return jax.nn.sigmoid(logits)


def _reference_f32(x, params):
    """Pure fp32 reference matching the PyTorch module."""
    w1, b1, w2, b2, w3, b3 = params
    h1 = jnp.maximum(x @ w1 + b1, 0.0)
    h2 = jnp.maximum(h1 @ w2 + b2, 0.0)
    return jax.nn.sigmoid(h2 @ w3 + b3)


if __name__ == "__main__":
    key = jax.random.PRNGKey(0)
    k_x, k_p = jax.random.split(key)

    batch = 16
    # Synthetic "MNIST" batch: values in [0, 1], flattened to 784 features.
    x = jax.random.uniform(k_x, (batch, NO_FEATURES), jnp.float32, 0.0, 1.0)
    params = init_params(k_p)
    padded_params = prepare_params(params)

    # Default tile: at batch=16 the megacore cap gives bt=8 -> grid=(2,), which
    # exercises the pipelined multi-step path at demo scale.
    out = mnist_net_forward(x, padded_params)
    out = jax.block_until_ready(out)

    assert out.shape == (batch, NO_CLASSES)

    ref_bf16 = _reference_bf16(x, params)
    assert jnp.allclose(out, ref_bf16, atol=1e-3, rtol=1e-3), \
        "mismatch vs bf16-input JAX reference"

    ref_f32 = _reference_f32(x, params)
    assert jnp.allclose(out, ref_f32, atol=3e-2, rtol=3e-2), \
        "mismatch vs fp32 PyTorch-equivalent reference"

    print("KERNEL_OK")
</pallas_src>

<mosaic_0001>
module attributes {stable_mosaic.version = 11 : i64} {
  func.func @_mlp_kernel(%arg0: i32, %arg1: memref<8x784xf32, #tpu.memory_space<vmem>>, %arg2: memref<784x256xbf16, #tpu.memory_space<vmem>>, %arg3: memref<1x256xf32, #tpu.memory_space<vmem>>, %arg4: memref<256x128xbf16, #tpu.memory_space<vmem>>, %arg5: memref<1x128xf32, #tpu.memory_space<vmem>>, %arg6: memref<128x10xbf16, #tpu.memory_space<vmem>>, %arg7: memref<1x10xf32, #tpu.memory_space<vmem>>, %arg8: memref<8x10xf32, #tpu.memory_space<vmem>>) attributes {dimension_semantics = [#tpu.dimension_semantics<parallel>], iteration_bounds = array<i64: 2>, scalar_prefetch = 0 : i64, scratch_operands = 0 : i64, tpu.core_type = #tpu.core_type<tc>, window_params = [{transform_indices = @transform_0, window_bounds = array<i64: 8, 784>}, {pipeline_mode = #tpu.pipeline_mode<synchronous>, transform_indices = @transform_1, window_bounds = array<i64: 784, 256>}, {pipeline_mode = #tpu.pipeline_mode<synchronous>, transform_indices = @transform_2, window_bounds = array<i64: 1, 256>}, {pipeline_mode = #tpu.pipeline_mode<synchronous>, transform_indices = @transform_3, window_bounds = array<i64: 256, 128>}, {pipeline_mode = #tpu.pipeline_mode<synchronous>, transform_indices = @transform_4, window_bounds = array<i64: 1, 128>}, {pipeline_mode = #tpu.pipeline_mode<synchronous>, transform_indices = @transform_5, window_bounds = array<i64: 128, 10>}, {pipeline_mode = #tpu.pipeline_mode<synchronous>, transform_indices = @transform_6, window_bounds = array<i64: 1, 10>}, {transform_indices = @transform_7, window_bounds = array<i64: 8, 10>}]} {
    %c0 = arith.constant 0 : index
    %c0_0 = arith.constant 0 : index
    %0 = vector.load %arg1[%c0, %c0_0] : memref<8x784xf32, #tpu.memory_space<vmem>>, vector<8x784xf32>
    %1 = arith.truncf %0 : vector<8x784xf32> to vector<8x784xbf16>
    %c0_1 = arith.constant 0 : index
    %c0_2 = arith.constant 0 : index
    %2 = vector.load %arg2[%c0_1, %c0_2] : memref<784x256xbf16, #tpu.memory_space<vmem>>, vector<784x256xbf16>
    %cst = arith.constant dense<0.000000e+00> : vector<8x256xf32>
    %3 = tpu.matmul %1, %2, %cst {dimension_numbers = #tpu.dot_dimension_numbers<[1], [0], [0], [1], [0, 0, 1, 1], [], []>} : vector<8x784xbf16>, vector<784x256xbf16>, vector<8x256xf32> -> vector<8x256xf32>
    %c0_3 = arith.constant 0 : index
    %c0_4 = arith.constant 0 : index
    %4 = vector.load %arg3[%c0_3, %c0_4] : memref<1x256xf32, #tpu.memory_space<vmem>>, vector<1x256xf32>
    %5 = vector.broadcast %4 : vector<1x256xf32> to vector<8x256xf32>
    %6 = arith.addf %3, %5 : vector<8x256xf32>
    %cst_5 = arith.constant 0.000000e+00 : f32
    %7 = vector.broadcast %cst_5 : f32 to vector<8x256xf32>
    %8 = arith.maximumf %6, %7 : vector<8x256xf32>
    %9 = arith.truncf %8 : vector<8x256xf32> to vector<8x256xbf16>
    %c0_6 = arith.constant 0 : index
    %c0_7 = arith.constant 0 : index
    %10 = vector.load %arg4[%c0_6, %c0_7] : memref<256x128xbf16, #tpu.memory_space<vmem>>, vector<256x128xbf16>
    %cst_8 = arith.constant dense<0.000000e+00> : vector<8x128xf32>
    %11 = tpu.matmul %9, %10, %cst_8 {dimension_numbers = #tpu.dot_dimension_numbers<[1], [0], [0], [1], [0, 0, 1, 1], [], []>} : vector<8x256xbf16>, vector<256x128xbf16>, vector<8x128xf32> -> vector<8x128xf32>
    %c0_9 = arith.constant 0 : index
    %c0_10 = arith.constant 0 : index
    %12 = vector.load %arg5[%c0_9, %c0_10] : memref<1x128xf32, #tpu.memory_space<vmem>>, vector<1x128xf32>
    %13 = vector.broadcast %12 : vector<1x128xf32> to vector<8x128xf32>
    %14 = arith.addf %11, %13 : vector<8x128xf32>
    %cst_11 = arith.constant 0.000000e+00 : f32
    %15 = vector.broadcast %cst_11 : f32 to vector<8x128xf32>
    %16 = arith.maximumf %14, %15 : vector<8x128xf32>
    %17 = arith.truncf %16 : vector<8x128xf32> to vector<8x128xbf16>
    %c0_12 = arith.constant 0 : index
    %c0_13 = arith.constant 0 : index
    %18 = vector.load %arg6[%c0_12, %c0_13] : memref<128x10xbf16, #tpu.memory_space<vmem>>, vector<128x10xbf16>
    %cst_14 = arith.constant dense<0.000000e+00> : vector<8x10xf32>
    %19 = tpu.matmul %17, %18, %cst_14 {dimension_numbers = #tpu.dot_dimension_numbers<[1], [0], [0], [1], [0, 0, 1, 1], [], []>} : vector<8x128xbf16>, vector<128x10xbf16>, vector<8x10xf32> -> vector<8x10xf32>
    %c0_15 = arith.constant 0 : index
    %c0_16 = arith.constant 0 : index
    %20 = vector.load %arg7[%c0_15, %c0_16] : memref<1x10xf32, #tpu.memory_space<vmem>>, vector<1x10xf32>
    %21 = vector.broadcast %20 : vector<1x10xf32> to vector<8x10xf32>
    %22 = arith.addf %19, %21 : vector<8x10xf32>
    %23 = arith.negf %22 : vector<8x10xf32>
    %24 = math.exp %23 : vector<8x10xf32>
    %cst_17 = arith.constant 1.000000e+00 : f32
    %25 = vector.broadcast %cst_17 : f32 to vector<8x10xf32>
    %26 = arith.addf %25, %24 : vector<8x10xf32>
    %27 = arith.divf %25, %26 : vector<8x10xf32>
    %c0_18 = arith.constant 0 : index
    %c0_19 = arith.constant 0 : index
    %28 = vector.load %arg8[%c0_18, %c0_19] : memref<8x10xf32, #tpu.memory_space<vmem>>, vector<8x10xf32>
    tpu.vector_store %arg8[%c0_18, %c0_19], %27 {strides = array<i32>} : memref<8x10xf32, #tpu.memory_space<vmem>>, vector<8x10xf32>,
    return
  }
  func.func @transform_0(%arg0: i32) -> (i32, i32) {
    %c0_i32 = arith.constant 0 : i32
    %c0_i32_0 = arith.constant 0 : i32
    return %arg0, %c0_i32 : i32, i32
  }
  func.func @transform_1(%arg0: i32) -> (i32, i32) {
    %c0_i32 = arith.constant 0 : i32
    %c0_i32_0 = arith.constant 0 : i32
    %c0_i32_1 = arith.constant 0 : i32
    return %c0_i32, %c0_i32_0 : i32, i32
  }
  func.func @transform_2(%arg0: i32) -> (i32, i32) {
    %c0_i32 = arith.constant 0 : i32
    %c0_i32_0 = arith.constant 0 : i32
    %c0_i32_1 = arith.constant 0 : i32
    return %c0_i32, %c0_i32_0 : i32, i32
  }
  func.func @transform_3(%arg0: i32) -> (i32, i32) {
    %c0_i32 = arith.constant 0 : i32
    %c0_i32_0 = arith.constant 0 : i32
    %c0_i32_1 = arith.constant 0 : i32
    return %c0_i32, %c0_i32_0 : i32, i32
  }
  func.func @transform_4(%arg0: i32) -> (i32, i32) {
    %c0_i32 = arith.constant 0 : i32
    %c0_i32_0 = arith.constant 0 : i32
    %c0_i32_1 = arith.constant 0 : i32
    return %c0_i32, %c0_i32_0 : i32, i32
  }
  func.func @transform_5(%arg0: i32) -> (i32, i32) {
    %c0_i32 = arith.constant 0 : i32
    %c0_i32_0 = arith.constant 0 : i32
    %c0_i32_1 = arith.constant 0 : i32
    return %c0_i32, %c0_i32_0 : i32, i32
  }
  func.func @transform_6(%arg0: i32) -> (i32, i32) {
    %c0_i32 = arith.constant 0 : i32
    %c0_i32_0 = arith.constant 0 : i32
    %c0_i32_1 = arith.constant 0 : i32
    return %c0_i32, %c0_i32_0 : i32, i32
  }
  func.func @transform_7(%arg0: i32) -> (i32, i32) {
    %c0_i32 = arith.constant 0 : i32
    %c0_i32_0 = arith.constant 0 : i32
    return %arg0, %c0_i32 : i32, i32
  }
}

</mosaic_0001>

<llo_original>
// kernel: mnist_net_forward.1
$region0: #{mnist_net_forward.1}
  #allocation0 [shape = 'u32[]', space=smem, size = 0x4, offset = 0x4, fixed_abs, tag = 'smem constant byte address 0x4 - core index']
  #allocation1 [shape = 'u32[72,128]{1,0:T(1,128)}', space=vmem, size = 0x9000, scoped, tag = 'internal scratch']
  %s0 = inlined_call_operand.hbm [shape: f32[16,784], index: 0, kind: input, shape index: {}]
  %s1 = inlined_call_operand.hbm [shape: bf16[784,256], index: 1, kind: input, shape index: {}]
  %s2 = inlined_call_operand.vmem [shape: f32[1,256], index: 2, kind: input, shape index: {}]
  %s3 = inlined_call_operand.hbm [shape: bf16[256,128], index: 3, kind: input, shape index: {}]
  %s4 = inlined_call_operand.vmem [shape: f32[1,128], index: 4, kind: input, shape index: {}]
  %s5 = inlined_call_operand.vmem [shape: bf16[128,10], index: 5, kind: input, shape index: {}]
  %s6 = inlined_call_operand.vmem [shape: f32[1,10], index: 6, kind: input, shape index: {}]
  %s7 = inlined_call_operand.hbm [shape: f32[16,10], index: 7, kind: output, shape index: {}]
  %s8 = sld [smem:[#allocation0]]
  $region73: #{mnist_net_forward.1} parent=0
    _
  %s10 = ssub.s32 1, %s8
  %s11 = scalar_select 0, %s10, %s8
  $region1: #{mnist_net_forward.1} parent=0
    #allocation2 [shape = 'u8[57344]{0}', space=vmem, size = 0xe000, scoped, tag = 'input window, operand 0']
    #allocation3 [shape = 's32[2]{0}', space=sflag, size = 0x8, scoped, tag = 'scoped memory for mnist_net_forward.1']
    #allocation4 [shape = 's32[2]{0}', space=sflag, size = 0x8, scoped, tag = 'scoped memory for mnist_net_forward.1']
    #allocation5 [shape = 'u8[401408]{0}', space=vmem, size = 0x62000, scoped, tag = 'input window, operand 1, single buffered']
    #allocation6 [shape = 's32[1]{0}', space=sflag, size = 0x4, scoped, tag = 'scoped memory for mnist_net_forward.1']
    #allocation7 [shape = 'u8[65536]{0}', space=vmem, size = 0x10000, scoped, tag = 'input window, operand 3, single buffered']
    #allocation8 [shape = 'u8[8192]{0}', space=vmem, size = 0x2000, scoped, tag = 'output window, operand 0']
    %12 = vsyncpa [#allocation3], 0
    %s13 = scalar_lea.sflag [#allocation3], 1
    %14 = vsyncpa %s13, 0
    %15 = vsyncpa [#allocation6], 0
    %16 = vsyncpa [#allocation4], 0
    %s17 = scalar_lea.sflag [#allocation4], 1
    %18 = vsyncpa %s17, 0
    loop: start=0, step=1, limit=4
    $region2: #{mnist_net_forward.1} parent=1 // loop_pre_header
      _
    $region3: #{mnist_net_forward.1} parent=1 // loop_header
      %s20 = sphi 0, %s24
      %p21 = scmp.ge.s32.totalorder %s20, 4
      %s30 = sphi 0, %s32
      %s33 = sphi 0, %s30
      %s34 = sphi 0, %s33
      %s50 = sphi 0, %s34
      %s54 = sphi 0, %s54
      %s56 = sphi 0, %s54
      %s57 = sphi 0, %s56
      %s71 = sphi 0, %s57
      %s75 = sphi 0, %s75
      %s77 = sphi 0, %s75
      %s78 = sphi 0, %s77
      %s92 = sphi 0, %s78
      %s96 = sphi 0, %s96
      %s98 = sphi 0, %s96
      %s99 = sphi 0, %s98
      %s113 = sphi 0, %s99
      %s117 = sphi 0, %s117
      %s119 = sphi 0, %s117
      %s120 = sphi 0, %s119
      %s134 = sphi 0, %s120
      %s138 = sphi 0, %s138
      %s140 = sphi 0, %s138
      %s141 = sphi 0, %s140
      %s155 = sphi 0, %s141
      %s159 = sphi 0, %s159
      %s161 = sphi 0, %s159
      %s162 = sphi 0, %s161
      %s176 = sphi 0, %s162
      %s182 = sphi 0, %s184
      %s185 = sphi 0, %s182
      %s186 = sphi 0, %s185
      %s202 = sphi 0, %s186
    $region4: #{mnist_net_forward.1} parent=1 // loop_header_branch
      %23 = sbr.rel (%p21) target = $region8
    $region5: #{mnist_net_forward.1} parent=1 // loop_body
      %s25 = ssub.s32 %s20, 1
      %s26 = ssub.s32 %s20, 2
      %s27 = sadd.s32 %s20, 1
      %s28 = ssub.s32 %s20, %s27
      %p29 = scmp.eq.s32.totalorder %s28, 0
      %s31 = sadd.s32 %s30, 1
      %s32 = scalar_select %p29, %s30, %s31
      %p35 = pneg %p29
      %p36 = scmp.eq.s32.totalorder %s20, 1
      %p37 = por %p35, %p36
      %p38 = scmp.ne.s32.totalorder %s30, %s33
      %p39 = scmp.eq.s32.totalorder %s20, 0
      %p40 = por %p38, %p39
      %p41 = scmp.ne.s32.totalorder %s30, %s33
      %p42 = scmp.eq.s32.totalorder %s25, 1
      %p43 = por %p41, %p42
      %p44 = scmp.ne.s32.totalorder %s33, %s34
      %p45 = scmp.eq.s32.totalorder %s25, 0
      %p46 = por %p44, %p45
      %p47 = scmp.ne.s32.totalorder %s33, %s34
      %p48 = scmp.eq.s32.totalorder %s26, 1
      %p49 = por %p47, %p48
      %p51 = scmp.ne.s32.totalorder %s34, %s50
      %p52 = scmp.eq.s32.totalorder %s26, 0
      %p53 = por %p51, %p52
      %s55 = sadd.s32 %s54, 1
      %p58 = scmp.eq.s32.totalorder %s20, 1
      %p59 = scmp.ne.s32.totalorder %s54, %s56
      %p60 = scmp.eq.s32.totalorder %s20, 0
      %p61 = por %p59, %p60
      %p62 = scmp.ne.s32.totalorder %s54, %s56
      %p63 = scmp.eq.s32.totalorder %s25, 1
      %p64 = por %p62, %p63
      %p65 = scmp.ne.s32.totalorder %s56, %s57
      %p66 = scmp.eq.s32.totalorder %s25, 0
      %p67 = por %p65, %p66
      %p68 = scmp.ne.s32.totalorder %s56, %s57
      %p69 = scmp.eq.s32.totalorder %s26, 1
      %p70 = por %p68, %p69
      %p72 = scmp.ne.s32.totalorder %s57, %s71
      %p73 = scmp.eq.s32.totalorder %s26, 0
      %p74 = por %p72, %p73
      %s76 = sadd.s32 %s75, 1
      %p79 = scmp.eq.s32.totalorder %s20, 1
      %p80 = scmp.ne.s32.totalorder %s75, %s77
      %p81 = scmp.eq.s32.totalorder %s20, 0
      %p82 = por %p80, %p81
      %p83 = scmp.ne.s32.totalorder %s75, %s77
      %p84 = scmp.eq.s32.totalorder %s25, 1
      %p85 = por %p83, %p84
      %p86 = scmp.ne.s32.totalorder %s77, %s78
      %p87 = scmp.eq.s32.totalorder %s25, 0
      %p88 = por %p86, %p87
      %p89 = scmp.ne.s32.totalorder %s77, %s78
      %p90 = scmp.eq.s32.totalorder %s26, 1
      %p91 = por %p89, %p90
      %p93 = scmp.ne.s32.totalorder %s78, %s92
      %p94 = scmp.eq.s32.totalorder %s26, 0
      %p95 = por %p93, %p94
      %s97 = sadd.s32 %s96, 1
      %p100 = scmp.eq.s32.totalorder %s20, 1
      %p101 = scmp.ne.s32.totalorder %s96, %s98
      %p102 = scmp.eq.s32.totalorder %s20, 0
      %p103 = por %p101, %p102
      %p104 = scmp.ne.s32.totalorder %s96, %s98
      %p105 = scmp.eq.s32.totalorder %s25, 1
      %p106 = por %p104, %p105
      %p107 = scmp.ne.s32.totalorder %s98, %s99
      %p108 = scmp.eq.s32.totalorder %s25, 0
      %p109 = por %p107, %p108
      %p110 = scmp.ne.s32.totalorder %s98, %s99
      %p111 = scmp.eq.s32.totalorder %s26, 1
      %p112 = por %p110, %p111
      %p114 = scmp.ne.s32.totalorder %s99, %s113
      %p115 = scmp.eq.s32.totalorder %s26, 0
      %p116 = por %p114, %p115
      %s118 = sadd.s32 %s117, 1
      %p121 = scmp.eq.s32.totalorder %s20, 1
      %p122 = scmp.ne.s32.totalorder %s117, %s119
      %p123 = scmp.eq.s32.totalorder %s20, 0
      %p124 = por %p122, %p123
      %p125 = scmp.ne.s32.totalorder %s117, %s119
      %p126 = scmp.eq.s32.totalorder %s25, 1
      %p127 = por %p125, %p126
      %p128 = scmp.ne.s32.totalorder %s119, %s120
      %p129 = scmp.eq.s32.totalorder %s25, 0
      %p130 = por %p128, %p129
      %p131 = scmp.ne.s32.totalorder %s119, %s120
      %p132 = scmp.eq.s32.totalorder %s26, 1
      %p133 = por %p131, %p132
      %p135 = scmp.ne.s32.totalorder %s120, %s134
      %p136 = scmp.eq.s32.totalorder %s26, 0
      %p137 = por %p135, %p136
      %s139 = sadd.s32 %s138, 1
      %p142 = scmp.eq.s32.totalorder %s20, 1
      %p143 = scmp.ne.s32.totalorder %s138, %s140
      %p144 = scmp.eq.s32.totalorder %s20, 0
      %p145 = por %p143, %p144
      %p146 = scmp.ne.s32.totalorder %s138, %s140
      %p147 = scmp.eq.s32.totalorder %s25, 1
      %p148 = por %p146, %p147
      %p149 = scmp.ne.s32.totalorder %s140, %s141
      %p150 = scmp.eq.s32.totalorder %s25, 0
      %p151 = por %p149, %p150
      %p152 = scmp.ne.s32.totalorder %s140, %s141
      %p153 = scmp.eq.s32.totalorder %s26, 1
      %p154 = por %p152, %p153
      %p156 = scmp.ne.s32.totalorder %s141, %s155
      %p157 = scmp.eq.s32.totalorder %s26, 0
      %p158 = por %p156, %p157
      %s160 = sadd.s32 %s159, 1
      %p163 = scmp.eq.s32.totalorder %s20, 1
      %p164 = scmp.ne.s32.totalorder %s159, %s161
      %p165 = scmp.eq.s32.totalorder %s20, 0
      %p166 = por %p164, %p165
      %p167 = scmp.ne.s32.totalorder %s159, %s161
      %p168 = scmp.eq.s32.totalorder %s25, 1
      %p169 = por %p167, %p168
      %p170 = scmp.ne.s32.totalorder %s161, %s162
      %p171 = scmp.eq.s32.totalorder %s25, 0
      %p172 = por %p170, %p171
      %p173 = scmp.ne.s32.totalorder %s161, %s162
      %p174 = scmp.eq.s32.totalorder %s26, 1
      %p175 = por %p173, %p174
      %p177 = scmp.ne.s32.totalorder %s162, %s176
      %p178 = scmp.eq.s32.totalorder %s26, 0
      %p179 = por %p177, %p178
      %s180 = ssub.s32 %s20, %s27
      %p181 = scmp.eq.s32.totalorder %s180, 0
      %s183 = sadd.s32 %s182, 1
      %s184 = scalar_select %p181, %s182, %s183
      %p187 = pneg %p181
      %p188 = scmp.eq.s32.totalorder %s20, 1
      %p189 = por %p187, %p188
      %p190 = scmp.ne.s32.totalorder %s182, %s185
      %p191 = scmp.eq.s32.totalorder %s20, 0
      %p192 = por %p190, %p191
      %p193 = scmp.ne.s32.totalorder %s182, %s185
      %p194 = scmp.eq.s32.totalorder %s25, 1
      %p195 = por %p193, %p194
      %p196 = scmp.ne.s32.totalorder %s185, %s186
      %p197 = scmp.eq.s32.totalorder %s25, 0
      %p198 = por %p196, %p197
      %p199 = scmp.ne.s32.totalorder %s185, %s186
      %p200 = scmp.eq.s32.totalorder %s26, 1
      %p201 = por %p199, %p200
      %p203 = scmp.ne.s32.totalorder %s186, %s202
      %p204 = scmp.eq.s32.totalorder %s26, 0
      %p205 = por %p203, %p204
      %p206 = scmp.le.s32.totalorder 1, %s20
      %p207 = scmp.lt.s32.totalorder %s20, 3
      %p208 = pnand %p206, %p207
      %p209 = pneg %p208
      // Predicated region
      $region9: #{mnist_net_forward.1} parent=5 // pred_check
        _
      $region10: #{mnist_net_forward.1} parent=5 // pred_check_branch
        %211 = sbr.rel (%p208) target = $region12
      $region11: #{mnist_net_forward.1} parent=5 // pred_region
        %s212 = ssub.s32 %s20, 1
        // Predicated region
        $region13: #{mnist_net_forward.1} parent=11 // pred_check
          %p213 = pneg %p67
        $region14: #{mnist_net_forward.1} parent=11 // pred_check_branch
          %215 = sbr.rel (%p213) target = $region16
        $region15: #{mnist_net_forward.1} parent=11 // pred_region
          %217 = vsyncadd [#allocation6], 0
          %s218 = sshll.u32 %s1, 4
          %s219 = int_to_ptr.hbm [resolvable:$true] %s218
          %s220 = sshll.u32 [#allocation5], 4
          %s221 = int_to_ptr.vmem [resolvable:$true] %s220
          %226 = dma.hbm_to_vmem [thread:$0]  %s219, 12544, %s221, [#allocation6], 128, 128, 8
        $region16: #{mnist_net_forward.1} parent=11 // pred_fallthru
          _
        // Predicated region
        $region17: #{mnist_net_forward.1} parent=11 // pred_check
          %p227 = pneg %p88
        $region18: #{mnist_net_forward.1} parent=11 // pred_check_branch
          %229 = sbr.rel (%p227) target = $region20
        $region19: #{mnist_net_forward.1} parent=11 // pred_region
          _
        $region20: #{mnist_net_forward.1} parent=11 // pred_fallthru
          _
        // Predicated region
        $region21: #{mnist_net_forward.1} parent=11 // pred_check
          %p230 = pneg %p109
        $region22: #{mnist_net_forward.1} parent=11 // pred_check_branch
          %232 = sbr.rel (%p230) target = $region24
        $region23: #{mnist_net_forward.1} parent=11 // pred_region
          %234 = vsyncadd [#allocation6], 0
          %s235 = sshll.u32 %s3, 4
          %s236 = int_to_ptr.hbm [resolvable:$true] %s235
          %s237 = sshll.u32 [#allocation7], 4
          %s238 = int_to_ptr.vmem [resolvable:$true] %s237
          %243 = dma.hbm_to_vmem [thread:$0]  %s236, 2048, %s238, [#allocation6], 64, 64, 4
        $region24: #{mnist_net_forward.1} parent=11 // pred_fallthru
          _
        // Predicated region
        $region25: #{mnist_net_forward.1} parent=11 // pred_check
          %p244 = pneg %p130
        $region26: #{mnist_net_forward.1} parent=11 // pred_check_branch
          %246 = sbr.rel (%p244) target = $region28
        $region27: #{mnist_net_forward.1} parent=11 // pred_region
          _
        $region28: #{mnist_net_forward.1} parent=11 // pred_fallthru
          _
        // Predicated region
        $region29: #{mnist_net_forward.1} parent=11 // pred_check
          %p247 = pneg %p151
        $region30: #{mnist_net_forward.1} parent=11 // pred_check_branch
          %249 = sbr.rel (%p247) target = $region32
        $region31: #{mnist_net_forward.1} parent=11 // pred_region
          _
        $region32: #{mnist_net_forward.1} parent=11 // pred_fallthru
          _
        // Predicated region
        $region33: #{mnist_net_forward.1} parent=11 // pred_check
          %p250 = pneg %p172
        $region34: #{mnist_net_forward.1} parent=11 // pred_check_branch
          %252 = sbr.rel (%p250) target = $region36
        $region35: #{mnist_net_forward.1} parent=11 // pred_region
          _
        $region36: #{mnist_net_forward.1} parent=11 // pred_fallthru
          _
      $region12: #{mnist_net_forward.1} parent=5 // pred_fallthru
        _
      %p253 = scmp.lt.s32.totalorder %s20, 2
      // Predicated region
      $region37: #{mnist_net_forward.1} parent=5 // pred_check
        %p254 = pneg %p253
      $region38: #{mnist_net_forward.1} parent=5 // pred_check_branch
        %256 = sbr.rel (%p254) target = $region40
      $region39: #{mnist_net_forward.1} parent=5 // pred_region
        // Predicated region
        $region41: #{mnist_net_forward.1} parent=39 // pred_check
          %p257 = pneg %p40
        $region42: #{mnist_net_forward.1} parent=39 // pred_check_branch
          %259 = sbr.rel (%p257) target = $region44
        $region43: #{mnist_net_forward.1} parent=39 // pred_region
          %s260 = sand.u32 %s30, 1
          %s261 = scalar_lea.sflag [#allocation3], %s260
          %s262 = sand.u32 %s30, 1
          %s263 = smul.addr %s262, 56
          %s264 = scalar_lea.vmem [#allocation2], %s263
          %266 = vsyncadd %s261, 0
          %s267 = smul.addr %s20, 7
          %s268 = smul.addr %s267, 8
          %s269 = scalar_lea.hbm %s0, %s268
          %s271 = sshll.u32 %s269, 4
          %s272 = int_to_ptr.hbm [resolvable:$true] %s271
          %s273 = sshll.u32 %s264, 4
          %s274 = int_to_ptr.vmem [resolvable:$true] %s273
          %276 = dma.hbm_to_vmem [thread:$0]  %s272, 896, %s274, %s261
        $region44: #{mnist_net_forward.1} parent=39 // pred_fallthru
          _
      $region40: #{mnist_net_forward.1} parent=5 // pred_fallthru
        _
      %p277 = scmp.le.s32.totalorder 1, %s20
      %p278 = scmp.lt.s32.totalorder %s20, 3
      %p279 = pnand %p277, %p278
      %p280 = pneg %p279
      // Predicated region
      $region45: #{mnist_net_forward.1} parent=5 // pred_check
        _
      $region46: #{mnist_net_forward.1} parent=5 // pred_check_branch
        %282 = sbr.rel (%p279) target = $region48
      $region47: #{mnist_net_forward.1} parent=5 // pred_region
        %s283 = ssub.s32 %s20, 1
        %s284 = sand.u32 %s33, 1
        %s285 = scalar_lea.sflag [#allocation3], %s284
        %s286 = sand.u32 %s33, 1
        %s287 = smul.addr %s286, 56
        %s288 = scalar_lea.vmem [#allocation2], %s287
        // Predicated region
        $region49: #{mnist_net_forward.1} parent=47 // pred_check
          %p289 = pneg %p46
        $region50: #{mnist_net_forward.1} parent=47 // pred_check_branch
          %291 = sbr.rel (%p289) target = $region52
        $region51: #{mnist_net_forward.1} parent=47 // pred_region
          %293 = dma.done %s285, 896
        $region52: #{mnist_net_forward.1} parent=47 // pred_fallthru
          _
        // Predicated region
        $region53: #{mnist_net_forward.1} parent=47 // pred_check
          %p294 = pneg %p67
        $region54: #{mnist_net_forward.1} parent=47 // pred_check_branch
          %296 = sbr.rel (%p294) target = $region56
        $region55: #{mnist_net_forward.1} parent=47 // pred_region
          %298 = dma.done [#allocation6], 12544
        $region56: #{mnist_net_forward.1} parent=47 // pred_fallthru
          _
        // Predicated region
        $region57: #{mnist_net_forward.1} parent=47 // pred_check
          %p299 = pneg %p109
        $region58: #{mnist_net_forward.1} parent=47 // pred_check_branch
          %301 = sbr.rel (%p299) target = $region60
        $region59: #{mnist_net_forward.1} parent=47 // pred_region
          %303 = dma.done [#allocation6], 2048
        $region60: #{mnist_net_forward.1} parent=47 // pred_fallthru
          _
        %s304 = sand.u32 %s33, 1
        %s305 = scalar_lea.sflag [#allocation3], %s304
        %s306 = sand.u32 %s33, 1
        %s307 = smul.addr %s306, 56
        %s308 = scalar_lea.vmem [#allocation2], %s307
        %p309 = pneg %p46
        %p310 = pneg %p43
        %p311 = pneg %p67
        %p312 = pneg %p64
        %p313 = pneg %p88
        %p314 = pneg %p85
        %p315 = pneg %p109
        %p316 = pneg %p106
        %p317 = pneg %p130
        %p318 = pneg %p127
        %p319 = pneg %p151
        %p320 = pneg %p148
        %p321 = pneg %p172
        %p322 = pneg %p169
        %p323 = pneg %p198
        %p324 = pneg %p195
        %s325 = sand.u32 %s185, 1
        %s326 = scalar_lea.sflag [#allocation4], %s325
        %s327 = sand.u32 %s185, 1
        %s328 = smul.addr %s327, 8
        %s329 = scalar_lea.vmem [#allocation8], %s328
        %v331 = vld [vmem:[%s288] sm:$0xff]
        %v332 = vld [vmem:[%s288 + $0x8] sm:$0xff]
        %v333 = vld [vmem:[%s288 + $0x10] sm:$0xff]
        %v334 = vld [vmem:[%s288 + $0x18] sm:$0xff]
        %v335 = vld [vmem:[%s288 + $0x20] sm:$0xff]
        %v336 = vld [vmem:[%s288 + $0x28] sm:$0xff]
        %v337 = vld [vmem:[%s288 + $0x30] sm:$0xff]
        %v338 = vpack.c.bf16 %v331, %v331
        %v339 = vpack.c.bf16 %v332, %v332
        %v340 = vpack.c.bf16 %v333, %v333
        %v341 = vpack.c.bf16 %v334, %v334
        %v342 = vpack.c.bf16 %v335, %v335
        %v343 = vpack.c.bf16 %v336, %v336
        %v344 = vpack.c.bf16 %v337, %v337
        %v345 = vld [vmem:[#allocation5] sm:$0xff]
        %v346 = vld [vmem:[#allocation5 + $0x8] sm:$0xff]
        %v347 = vld [vmem:[#allocation5 + $0x10] sm:$0xff]
        %v348 = vld [vmem:[#allocation5 + $0x18] sm:$0xff]
        %v349 = vld [vmem:[#allocation5 + $0x20] sm:$0xff]
        %v350 = vld [vmem:[#allocation5 + $0x28] sm:$0xff]
        %v351 = vld [vmem:[#allocation5 + $0x30] sm:$0xff]
        %v352 = vld [vmem:[#allocation5 + $0x38] sm:$0xff]
        %v353 = vld [vmem:[#allocation5 + $0x40] sm:$0xff]
        %v354 = vld [vmem:[#allocation5 + $0x48] sm:$0xff]
        %v355 = vld [vmem:[#allocation5 + $0x50] sm:$0xff]
        %v356 = vld [vmem:[#allocation5 + $0x58] sm:$0xff]
        %v357 = vld [vmem:[#allocation5 + $0x60] sm:$0xff]
        %v358 = vld [vmem:[#allocation5 + $0x68] sm:$0xff]
        %v359 = vld [vmem:[#allocation5 + $0x70] sm:$0xff]
        %v360 = vld [vmem:[#allocation5 + $0x78] sm:$0xff]
        %v361 = vld [vmem:[#allocation5 + $0x80] sm:$0xff]
        %v362 = vld [vmem:[#allocation5 + $0x88] sm:$0xff]
        %v363 = vld [vmem:[#allocation5 + $0x90] sm:$0xff]
        %v364 = vld [vmem:[#allocation5 + $0x98] sm:$0xff]
        %v365 = vld [vmem:[#allocation5 + $0xa0] sm:$0xff]
        %v366 = vld [vmem:[#allocation5 + $0xa8] sm:$0xff]
        %v367 = vld [vmem:[#allocation5 + $0xb0] sm:$0xff]
        %v368 = vld [vmem:[#allocation5 + $0xb8] sm:$0xff]
        %v369 = vld [vmem:[#allocation5 + $0xc0] sm:$0xff]
        %v370 = vld [vmem:[#allocation5 + $0xc8] sm:$0xff]
        %v371 = vld [vmem:[#allocation5 + $0xd0] sm:$0xff]
        %v372 = vld [vmem:[#allocation5 + $0xd8] sm:$0xff]
        %v373 = vld [vmem:[#allocation5 + $0xe0] sm:$0xff]
        %v374 = vld [vmem:[#allocation5 + $0xe8] sm:$0xff]
        %v375 = vld [vmem:[#allocation5 + $0xf0] sm:$0xff]
        %v376 = vld [vmem:[#allocation5 + $0xf8] sm:$0xff]
        %v377 = vld [vmem:[#allocation5 + $0x100] sm:$0xff]
        %v378 = vld [vmem:[#allocation5 + $0x108] sm:$0xff]
        %v379 = vld [vmem:[#allocation5 + $0x110] sm:$0xff]
        %v380 = vld [vmem:[#allocation5 + $0x118] sm:$0xff]
        %v381 = vld [vmem:[#allocation5 + $0x120] sm:$0xff]
        %v382 = vld [vmem:[#allocation5 + $0x128] sm:$0xff]
        %v383 = vld [vmem:[#allocation5 + $0x130] sm:$0xff]
        %v384 = vld [vmem:[#allocation5 + $0x138] sm:$0xff]
        %v385 = vld [vmem:[#allocation5 + $0x140] sm:$0xff]
        %v386 = vld [vmem:[#allocation5 + $0x148] sm:$0xff]
        %v387 = vld [vmem:[#allocation5 + $0x150] sm:$0xff]
        %v388 = vld [vmem:[#allocation5 + $0x158] sm:$0xff]
        %v389 = vld [vmem:[#allocation5 + $0x160] sm:$0xff]
        %v390 = vld [vmem:[#allocation5 + $0x168] sm:$0xff]
        %v391 = vld [vmem:[#allocation5 + $0x170] sm:$0xff]
        %v392 = vld [vmem:[#allocation5 + $0x178] sm:$0xff]
        %v393 = vld [vmem:[#allocation5 + $0x180] sm:$0xff]
        %v394 = vld [vmem:[#allocation5 + $0x188] sm:$0xff]
        %v395 = vld [vmem:[#allocation5 + $0x190] sm:$0xff]
        %v396 = vld [vmem:[#allocation5 + $0x198] sm:$0xff]
        %v397 = vld [vmem:[#allocation5 + $0x1a0] sm:$0xff]
        %v398 = vld [vmem:[#allocation5 + $0x1a8] sm:$0xff]
        %v399 = vld [vmem:[#allocation5 + $0x1b0] sm:$0xff]
        %v400 = vld [vmem:[#allocation5 + $0x1b8] sm:$0xff]
        %v401 = vld [vmem:[#allocation5 + $0x1c0] sm:$0xff]
        %v402 = vld [vmem:[#allocation5 + $0x1c8] sm:$0xff]
        %v403 = vld [vmem:[#allocation5 + $0x1d0] sm:$0xff]
        %v404 = vld [vmem:[#allocation5 + $0x1d8] sm:$0xff]
        %v405 = vld [vmem:[#allocation5 + $0x1e0] sm:$0xff]
        %v406 = vld [vmem:[#allocation5 + $0x1e8] sm:$0xff]
        %v407 = vld [vmem:[#allocation5 + $0x1f0] sm:$0xff]
        %v408 = vld [vmem:[#allocation5 + $0x1f8] sm:$0xff]
        %v409 = vld [vmem:[#allocation5 + $0x200] sm:$0xff]
        %v410 = vld [vmem:[#allocation5 + $0x208] sm:$0xff]
        %v411 = vld [vmem:[#allocation5 + $0x210] sm:$0xff]
        %v412 = vld [vmem:[#allocation5 + $0x218] sm:$0xff]
        %v413 = vld [vmem:[#allocation5 + $0x220] sm:$0xff]
        %v414 = vld [vmem:[#allocation5 + $0x228] sm:$0xff]
        %v415 = vld [vmem:[#allocation5 + $0x230] sm:$0xff]
        %v416 = vld [vmem:[#allocation5 + $0x238] sm:$0xff]
        %v417 = vld [vmem:[#allocation5 + $0x240] sm:$0xff]
        %v418 = vld [vmem:[#allocation5 + $0x248] sm:$0xff]
        %v419 = vld [vmem:[#allocation5 + $0x250] sm:$0xff]
        %v420 = vld [vmem:[#allocation5 + $0x258] sm:$0xff]
        %v421 = vld [vmem:[#allocation5 + $0x260] sm:$0xff]
        %v422 = vld [vmem:[#allocation5 + $0x268] sm:$0xff]
        %v423 = vld [vmem:[#allocation5 + $0x270] sm:$0xff]
        %v424 = vld [vmem:[#allocation5 + $0x278] sm:$0xff]
        %v425 = vld [vmem:[#allocation5 + $0x280] sm:$0xff]
        %v426 = vld [vmem:[#allocation5 + $0x288] sm:$0xff]
        %v427 = vld [vmem:[#allocation5 + $0x290] sm:$0xff]
        %v428 = vld [vmem:[#allocation5 + $0x298] sm:$0xff]
        %v429 = vld [vmem:[#allocation5 + $0x2a0] sm:$0xff]
        %v430 = vld [vmem:[#allocation5 + $0x2a8] sm:$0xff]
        %v431 = vld [vmem:[#allocation5 + $0x2b0] sm:$0xff]
        %v432 = vld [vmem:[#allocation5 + $0x2b8] sm:$0xff]
        %v433 = vld [vmem:[#allocation5 + $0x2c0] sm:$0xff]
        %v434 = vld [vmem:[#allocation5 + $0x2c8] sm:$0xff]
        %v435 = vld [vmem:[#allocation5 + $0x2d0] sm:$0xff]
        %v436 = vld [vmem:[#allocation5 + $0x2d8] sm:$0xff]
        %v437 = vld [vmem:[#allocation5 + $0x2e0] sm:$0xff]
        %v438 = vld [vmem:[#allocation5 + $0x2e8] sm:$0xff]
        %v439 = vld [vmem:[#allocation5 + $0x2f0] sm:$0xff]
        %v440 = vld [vmem:[#allocation5 + $0x2f8] sm:$0xff]
        %v441 = vld [vmem:[#allocation5 + $0x300] sm:$0xff]
        %v442 = vld [vmem:[#allocation5 + $0x308] sm:$0xff]
        %v443 = vld [vmem:[%s2] sm:$0x3]
        %v445 = vperm.slane %v443, 0
        %v446 = vperm.slane %v443, 1
        %v547 = vunpack.c.l.b16 %v345
        %v548 = vunpack.c.h.b16 %v345
        %v549 = vunpack.c.l.b16 %v346
        %v550 = vunpack.c.h.b16 %v346
        %v551 = vunpack.c.l.b16 %v347
        %v552 = vunpack.c.h.b16 %v347
        %v553 = vunpack.c.l.b16 %v348
        %v554 = vunpack.c.h.b16 %v348
        %v555 = vunpack.c.l.b16 %v349
        %v556 = vunpack.c.h.b16 %v349
        %v557 = vunpack.c.l.b16 %v350
        %v558 = vunpack.c.h.b16 %v350
        %v559 = vunpack.c.l.b16 %v351
        %v560 = vunpack.c.h.b16 %v351
        %v561 = vunpack.c.l.b16 %v352
        %v562 = vunpack.c.h.b16 %v352
        %v563 = vunpack.c.l.b16 %v353
        %v564 = vunpack.c.h.b16 %v353
        %v565 = vunpack.c.l.b16 %v354
        %v566 = vunpack.c.h.b16 %v354
        %v567 = vunpack.c.l.b16 %v355
        %v568 = vunpack.c.h.b16 %v355
        %v569 = vunpack.c.l.b16 %v356
        %v570 = vunpack.c.h.b16 %v356
        %v571 = vunpack.c.l.b16 %v357
        %v572 = vunpack.c.h.b16 %v357
        %v573 = vunpack.c.l.b16 %v358
        %v574 = vunpack.c.h.b16 %v358
        %v575 = vunpack.c.l.b16 %v359
        %v576 = vunpack.c.h.b16 %v359
        %v577 = vunpack.c.l.b16 %v360
        %v578 = vunpack.c.h.b16 %v360
        %v579 = vunpack.c.l.b16 %v361
        %v580 = vunpack.c.h.b16 %v361
        %v581 = vunpack.c.l.b16 %v362
        %v582 = vunpack.c.h.b16 %v362
        %v583 = vunpack.c.l.b16 %v363
        %v584 = vunpack.c.h.b16 %v363
        %v585 = vunpack.c.l.b16 %v364
        %v586 = vunpack.c.h.b16 %v364
        %v587 = vunpack.c.l.b16 %v365
        %v588 = vunpack.c.h.b16 %v365
        %v589 = vunpack.c.l.b16 %v366
        %v590 = vunpack.c.h.b16 %v366
        %v591 = vunpack.c.l.b16 %v367
        %v592 = vunpack.c.h.b16 %v367
        %v593 = vunpack.c.l.b16 %v368
        %v594 = vunpack.c.h.b16 %v368
        %v595 = vunpack.c.l.b16 %v369
        %v596 = vunpack.c.h.b16 %v369
        %v597 = vunpack.c.l.b16 %v370
        %v598 = vunpack.c.h.b16 %v370
        %v599 = vunpack.c.l.b16 %v371
        %v600 = vunpack.c.h.b16 %v371
        %v601 = vunpack.c.l.b16 %v372
        %v602 = vunpack.c.h.b16 %v372
        %v603 = vunpack.c.l.b16 %v373
        %v604 = vunpack.c.h.b16 %v373
        %v605 = vunpack.c.l.b16 %v374
        %v606 = vunpack.c.h.b16 %v374
        %v607 = vunpack.c.l.b16 %v375
        %v608 = vunpack.c.h.b16 %v375
        %v609 = vunpack.c.l.b16 %v376
        %v610 = vunpack.c.h.b16 %v376
        %v611 = vunpack.c.l.b16 %v377
        %v612 = vunpack.c.h.b16 %v377
        %v613 = vunpack.c.l.b16 %v378
        %v614 = vunpack.c.h.b16 %v378
        %v615 = vunpack.c.l.b16 %v379
        %v616 = vunpack.c.h.b16 %v379
        %v617 = vunpack.c.l.b16 %v380
        %v618 = vunpack.c.h.b16 %v380
        %v619 = vunpack.c.l.b16 %v381
        %v620 = vunpack.c.h.b16 %v381
        %v621 = vunpack.c.l.b16 %v382
        %v622 = vunpack.c.h.b16 %v382
        %v623 = vunpack.c.l.b16 %v383
        %v624 = vunpack.c.h.b16 %v383
        %v625 = vunpack.c.l.b16 %v384
        %v626 = vunpack.c.h.b16 %v384
        %v627 = vunpack.c.l.b16 %v385
        %v628 = vunpack.c.h.b16 %v385
        %v629 = vunpack.c.l.b16 %v386
        %v630 = vunpack.c.h.b16 %v386
        %v631 = vunpack.c.l.b16 %v387
        %v632 = vunpack.c.h.b16 %v387
        %v633 = vunpack.c.l.b16 %v388
        %v634 = vunpack.c.h.b16 %v388
        %v635 = vunpack.c.l.b16 %v389
        %v636 = vunpack.c.h.b16 %v389
        %v637 = vunpack.c.l.b16 %v390
        %v638 = vunpack.c.h.b16 %v390
        %v639 = vunpack.c.l.b16 %v391
        %v640 = vunpack.c.h.b16 %v391
        %v641 = vunpack.c.l.b16 %v392
        %v642 = vunpack.c.h.b16 %v392
        %v643 = vunpack.c.l.b16 %v393
        %v644 = vunpack.c.h.b16 %v393
        %v645 = vunpack.c.l.b16 %v394
        %v646 = vunpack.c.h.b16 %v394
        %v647 = vunpack.c.l.b16 %v395
        %v648 = vunpack.c.h.b16 %v395
        %v649 = vunpack.c.l.b16 %v396
        %v650 = vunpack.c.h.b16 %v396
        %v651 = vunpack.c.l.b16 %v397
        %v652 = vunpack.c.h.b16 %v397
        %v653 = vunpack.c.l.b16 %v398
        %v654 = vunpack.c.h.b16 %v398
        %v655 = vunpack.c.l.b16 %v399
        %v656 = vunpack.c.h.b16 %v399
        %v657 = vunpack.c.l.b16 %v400
        %v658 = vunpack.c.h.b16 %v400
        %v659 = vunpack.c.l.b16 %v401
        %v660 = vunpack.c.h.b16 %v401
        %v661 = vunpack.c.l.b16 %v402
        %v662 = vunpack.c.h.b16 %v402
        %v663 = vunpack.c.l.b16 %v403
        %v664 = vunpack.c.h.b16 %v403
        %v665 = vunpack.c.l.b16 %v404
        %v666 = vunpack.c.h.b16 %v404
        %v667 = vunpack.c.l.b16 %v405
        %v668 = vunpack.c.h.b16 %v405
        %v669 = vunpack.c.l.b16 %v406
        %v670 = vunpack.c.h.b16 %v406
        %v671 = vunpack.c.l.b16 %v407
        %v672 = vunpack.c.h.b16 %v407
        %v673 = vunpack.c.l.b16 %v408
        %v674 = vunpack.c.h.b16 %v408
        %v675 = vunpack.c.l.b16 %v409
        %v676 = vunpack.c.h.b16 %v409
        %v677 = vunpack.c.l.b16 %v410
        %v678 = vunpack.c.h.b16 %v410
        %v679 = vunpack.c.l.b16 %v411
        %v680 = vunpack.c.h.b16 %v411
        %v681 = vunpack.c.l.b16 %v412
        %v682 = vunpack.c.h.b16 %v412
        %v683 = vunpack.c.l.b16 %v413
        %v684 = vunpack.c.h.b16 %v413
        %v685 = vunpack.c.l.b16 %v414
        %v686 = vunpack.c.h.b16 %v414
        %v687 = vunpack.c.l.b16 %v415
        %v688 = vunpack.c.h.b16 %v415
        %v689 = vunpack.c.l.b16 %v416
        %v690 = vunpack.c.h.b16 %v416
        %v691 = vunpack.c.l.b16 %v417
        %v692 = vunpack.c.h.b16 %v417
        %v693 = vunpack.c.l.b16 %v418
        %v694 = vunpack.c.h.b16 %v418
        %v695 = vunpack.c.l.b16 %v419
        %v696 = vunpack.c.h.b16 %v419
        %v697 = vunpack.c.l.b16 %v420
        %v698 = vunpack.c.h.b16 %v420
        %v699 = vunpack.c.l.b16 %v421
        %v700 = vunpack.c.h.b16 %v421
        %v701 = vunpack.c.l.b16 %v422
        %v702 = vunpack.c.h.b16 %v422
        %v703 = vunpack.c.l.b16 %v423
        %v704 = vunpack.c.h.b16 %v423
        %v705 = vunpack.c.l.b16 %v424
        %v706 = vunpack.c.h.b16 %v424
        %v707 = vunpack.c.l.b16 %v425
        %v708 = vunpack.c.h.b16 %v425
        %v709 = vunpack.c.l.b16 %v426
        %v710 = vunpack.c.h.b16 %v426
        %v711 = vunpack.c.l.b16 %v427
        %v712 = vunpack.c.h.b16 %v427
        %v713 = vunpack.c.l.b16 %v428
        %v714 = vunpack.c.h.b16 %v428
        %v715 = vunpack.c.l.b16 %v429
        %v716 = vunpack.c.h.b16 %v429
        %v717 = vunpack.c.l.b16 %v430
        %v718 = vunpack.c.h.b16 %v430
        %v719 = vunpack.c.l.b16 %v431
        %v720 = vunpack.c.h.b16 %v431
        %v721 = vunpack.c.l.b16 %v432
        %v722 = vunpack.c.h.b16 %v432
        %v723 = vunpack.c.l.b16 %v433
        %v724 = vunpack.c.h.b16 %v433
        %v725 = vunpack.c.l.b16 %v434
        %v726 = vunpack.c.h.b16 %v434
        %v727 = vunpack.c.l.b16 %v435
        %v728 = vunpack.c.h.b16 %v435
        %v729 = vunpack.c.l.b16 %v436
        %v730 = vunpack.c.h.b16 %v436
        %v731 = vunpack.c.l.b16 %v437
        %v732 = vunpack.c.h.b16 %v437
        %v733 = vunpack.c.l.b16 %v438
        %v734 = vunpack.c.h.b16 %v438
        %v735 = vunpack.c.l.b16 %v439
        %v736 = vunpack.c.h.b16 %v439
        %v737 = vunpack.c.l.b16 %v440
        %v738 = vunpack.c.h.b16 %v440
        %v739 = vunpack.c.l.b16 %v441
        %v740 = vunpack.c.h.b16 %v441
        %v741 = vunpack.c.l.b16 %v442
        %v742 = vunpack.c.h.b16 %v442
        %v743 = vpack.c.b16 %v549, %v547
        %v744 = vpack.c.b16 %v550, %v548
        %v745 = vpack.c.b16 %v553, %v551
        %v746 = vpack.c.b16 %v554, %v552
        %v747 = vpack.c.b16 %v557, %v555
        %v748 = vpack.c.b16 %v558, %v556
        %v749 = vpack.c.b16 %v561, %v559
        %v750 = vpack.c.b16 %v562, %v560
        %v751 = vpack.c.b16 %v565, %v563
        %v752 = vpack.c.b16 %v566, %v564
        %v753 = vpack.c.b16 %v569, %v567
        %v754 = vpack.c.b16 %v570, %v568
        %v755 = vpack.c.b16 %v573, %v571
        %v756 = vpack.c.b16 %v574, %v572
        %v757 = vpack.c.b16 %v577, %v575
        %v758 = vpack.c.b16 %v578, %v576
        %v759 = vpack.c.b16 %v581, %v579
        %v760 = vpack.c.b16 %v582, %v580
        %v761 = vpack.c.b16 %v585, %v583
        %v762 = vpack.c.b16 %v586, %v584
        %v763 = vpack.c.b16 %v589, %v587
        %v764 = vpack.c.b16 %v590, %v588
        %v765 = vpack.c.b16 %v593, %v591
        %v766 = vpack.c.b16 %v594, %v592
        %v767 = vpack.c.b16 %v597, %v595
        %v768 = vpack.c.b16 %v598, %v596
        %v769 = vpack.c.b16 %v601, %v599
        %v770 = vpack.c.b16 %v602, %v600
        %v771 = vpack.c.b16 %v605, %v603
        %v772 = vpack.c.b16 %v606, %v604
        %v773 = vpack.c.b16 %v609, %v607
        %v774 = vpack.c.b16 %v610, %v608
        %v775 = vpack.c.b16 %v613, %v611
        %v776 = vpack.c.b16 %v614, %v612
        %v777 = vpack.c.b16 %v617, %v615
        %v778 = vpack.c.b16 %v618, %v616
        %v779 = vpack.c.b16 %v621, %v619
        %v780 = vpack.c.b16 %v622, %v620
        %v781 = vpack.c.b16 %v625, %v623
        %v782 = vpack.c.b16 %v626, %v624
        %v783 = vpack.c.b16 %v629, %v627
        %v784 = vpack.c.b16 %v630, %v628
        %v785 = vpack.c.b16 %v633, %v631
        %v786 = vpack.c.b16 %v634, %v632
        %v787 = vpack.c.b16 %v637, %v635
        %v788 = vpack.c.b16 %v638, %v636
        %v789 = vpack.c.b16 %v641, %v639
        %v790 = vpack.c.b16 %v642, %v640
        %v791 = vpack.c.b16 %v645, %v643
        %v792 = vpack.c.b16 %v646, %v644
        %v793 = vpack.c.b16 %v649, %v647
        %v794 = vpack.c.b16 %v650, %v648
        %v795 = vpack.c.b16 %v653, %v651
        %v796 = vpack.c.b16 %v654, %v652
        %v797 = vpack.c.b16 %v657, %v655
        %v798 = vpack.c.b16 %v658, %v656
        %v799 = vpack.c.b16 %v661, %v659
        %v800 = vpack.c.b16 %v662, %v660
        %v801 = vpack.c.b16 %v665, %v663
        %v802 = vpack.c.b16 %v666, %v664
        %v803 = vpack.c.b16 %v669, %v667
        %v804 = vpack.c.b16 %v670, %v668
        %v805 = vpack.c.b16 %v673, %v671
        %v806 = vpack.c.b16 %v674, %v672
        %v807 = vpack.c.b16 %v677, %v675
        %v808 = vpack.c.b16 %v678, %v676
        %v809 = vpack.c.b16 %v681, %v679
        %v810 = vpack.c.b16 %v682, %v680
        %v811 = vpack.c.b16 %v685, %v683
        %v812 = vpack.c.b16 %v686, %v684
        %v813 = vpack.c.b16 %v689, %v687
        %v814 = vpack.c.b16 %v690, %v688
        %v815 = vpack.c.b16 %v693, %v691
        %v816 = vpack.c.b16 %v694, %v692
        %v817 = vpack.c.b16 %v697, %v695
        %v818 = vpack.c.b16 %v698, %v696
        %v819 = vpack.c.b16 %v701, %v699
        %v820 = vpack.c.b16 %v702, %v700
        %v821 = vpack.c.b16 %v705, %v703
        %v822 = vpack.c.b16 %v706, %v704
        %v823 = vpack.c.b16 %v709, %v707
        %v824 = vpack.c.b16 %v710, %v708
        %v825 = vpack.c.b16 %v713, %v711
        %v826 = vpack.c.b16 %v714, %v712
        %v827 = vpack.c.b16 %v717, %v715
        %v828 = vpack.c.b16 %v718, %v716
        %v829 = vpack.c.b16 %v721, %v719
        %v830 = vpack.c.b16 %v722, %v720
        %v831 = vpack.c.b16 %v725, %v723
        %v832 = vpack.c.b16 %v726, %v724
        %v833 = vpack.c.b16 %v729, %v727
        %v834 = vpack.c.b16 %v730, %v728
        %v835 = vpack.c.b16 %v733, %v731
        %v836 = vpack.c.b16 %v734, %v732
        %v837 = vpack.c.b16 %v737, %v735
        %v838 = vpack.c.b16 %v738, %v736
        %v839 = vpack.c.b16 %v741, %v739
        %v840 = vpack.c.b16 %v742, %v740
        %vm939 = vcmask 130048
        %v941 = vsel %vm939, %v344, 0
        %943 = vmatpush.bf16.msra.mxu0 %v757
        %944 = vmatpush.bf16.msra.mxu0 %v755
        %945 = vmatpush.bf16.msra.mxu0 %v753
        %946 = vmatpush.bf16.msra.mxu0 %v751
        %947 = vmatpush.bf16.msra.mxu0 %v749
        %948 = vmatpush.bf16.msra.mxu0 %v747
        %949 = vmatpush.bf16.msra.mxu0 %v745
        %950 = vmatpush.bf16.msra.mxu0 %v743
        %951 = vmatmul.bf16.gmra.mxu0 %v338
        %v952 = vpop.f32.mrf.mxu0
        %v953 = vadd.f32 %v445, %v952
        %v954 = vpop.f32.mrf.mxu0
        %955 = vdwg.mxu0
        %956 = vmatpush.bf16.msra.mxu0 %v773
        %957 = vmatpush.bf16.msra.mxu0 %v771
        %958 = vmatpush.bf16.msra.mxu0 %v769
        %959 = vmatpush.bf16.msra.mxu0 %v767
        %960 = vmatpush.bf16.msra.mxu0 %v765
        %961 = vmatpush.bf16.msra.mxu0 %v763
        %962 = vmatpush.bf16.msra.mxu0 %v761
        %963 = vmatpush.bf16.msra.mxu0 %v759
        %964 = vmatmul.bf16.gmra.mxu0 %v339
        %v965 = vpop.f32.mrf.mxu0
        %v966 = vadd.f32 %v953, %v965
        %v967 = vpop.f32.mrf.mxu0
        %968 = vdwg.mxu0
        %969 = vmatpush.bf16.msra.mxu0 %v789
        %970 = vmatpush.bf16.msra.mxu0 %v787
        %971 = vmatpush.bf16.msra.mxu0 %v785
        %972 = vmatpush.bf16.msra.mxu0 %v783
        %973 = vmatpush.bf16.msra.mxu0 %v781
        %974 = vmatpush.bf16.msra.mxu0 %v779
        %975 = vmatpush.bf16.msra.mxu0 %v777
        %976 = vmatpush.bf16.msra.mxu0 %v775
        %977 = vmatmul.bf16.gmra.mxu0 %v340
        %v978 = vpop.f32.mrf.mxu0
        %v979 = vadd.f32 %v966, %v978
        %v980 = vpop.f32.mrf.mxu0
        %981 = vdwg.mxu0
        %982 = vmatpush.bf16.msra.mxu0 %v805
        %983 = vmatpush.bf16.msra.mxu0 %v803
        %984 = vmatpush.bf16.msra.mxu0 %v801
        %985 = vmatpush.bf16.msra.mxu0 %v799
        %986 = vmatpush.bf16.msra.mxu0 %v797
        %987 = vmatpush.bf16.msra.mxu0 %v795
        %988 = vmatpush.bf16.msra.mxu0 %v793
        %989 = vmatpush.bf16.msra.mxu0 %v791
        %990 = vmatmul.bf16.gmra.mxu0 %v341
        %v991 = vpop.f32.mrf.mxu0
        %v992 = vadd.f32 %v979, %v991
        %v993 = vpop.f32.mrf.mxu0
        %994 = vdwg.mxu0
        %995 = vmatpush.bf16.msra.mxu0 %v821
        %996 = vmatpush.bf16.msra.mxu0 %v819
        %997 = vmatpush.bf16.msra.mxu0 %v817
        %998 = vmatpush.bf16.msra.mxu0 %v815
        %999 = vmatpush.bf16.msra.mxu0 %v813
        %1000 = vmatpush.bf16.msra.mxu0 %v811
        %1001 = vmatpush.bf16.msra.mxu0 %v809
        %1002 = vmatpush.bf16.msra.mxu0 %v807
        %1003 = vmatmul.bf16.gmra.mxu0 %v342
        %v1004 = vpop.f32.mrf.mxu0
        %v1005 = vadd.f32 %v992, %v1004
        %v1006 = vpop.f32.mrf.mxu0
        %1007 = vdwg.mxu0
        %1008 = vmatpush.bf16.msra.mxu0 %v837
        %1009 = vmatpush.bf16.msra.mxu0 %v835
        %1010 = vmatpush.bf16.msra.mxu0 %v833
        %1011 = vmatpush.bf16.msra.mxu0 %v831
        %1012 = vmatpush.bf16.msra.mxu0 %v829
        %1013 = vmatpush.bf16.msra.mxu0 %v827
        %1014 = vmatpush.bf16.msra.mxu0 %v825
        %1015 = vmatpush.bf16.msra.mxu0 %v823
        %1016 = vmatmul.bf16.gmra.mxu0 %v343
        %v1017 = vpop.f32.mrf.mxu0
        %v1018 = vadd.f32 %v1005, %v1017
        %v1019 = vpop.f32.mrf.mxu0
        %1020 = vdwg.mxu0
        %1021 = vmatpush.bf16.msra.mxu0 0
        %1022 = vmatpush.bf16.msra.mxu0 0
        %1023 = vmatpush.bf16.msra.mxu0 0
        %1024 = vmatpush.bf16.msra.mxu0 0
        %1025 = vmatpush.bf16.msra.mxu0 0
        %1026 = vmatpush.bf16.msra.mxu0 0
        %1027 = vmatpush.bf16.msra.mxu0 0
        %1028 = vmatpush.bf16.msra.mxu0 %v839
        %1029 = vmatmul.bf16.gmra.mxu0 %v941
        %v1030 = vpop.f32.mrf.mxu0
        %v1031 = vadd.f32 %v1018, %v1030
        %v1032 = vpop.f32.mrf.mxu0
        %1033 = vdwg.mxu0
        %1034 = vmatpush.bf16.msra.mxu0 %v758
        %1035 = vmatpush.bf16.msra.mxu0 %v756
        %1036 = vmatpush.bf16.msra.mxu0 %v754
        %1037 = vmatpush.bf16.msra.mxu0 %v752
        %1038 = vmatpush.bf16.msra.mxu0 %v750
        %1039 = vmatpush.bf16.msra.mxu0 %v748
        %1040 = vmatpush.bf16.msra.mxu0 %v746
        %1041 = vmatpush.bf16.msra.mxu0 %v744
        %1042 = vmatmul.bf16.gmra.mxu0 %v338
        %v1043 = vpop.f32.mrf.mxu0
        %v1044 = vadd.f32 %v446, %v1043
        %v1045 = vpop.f32.mrf.mxu0
        %1046 = vdwg.mxu0
        %1047 = vmatpush.bf16.msra.mxu0 %v774
        %1048 = vmatpush.bf16.msra.mxu0 %v772
        %1049 = vmatpush.bf16.msra.mxu0 %v770
        %1050 = vmatpush.bf16.msra.mxu0 %v768
        %1051 = vmatpush.bf16.msra.mxu0 %v766
        %1052 = vmatpush.bf16.msra.mxu0 %v764
        %1053 = vmatpush.bf16.msra.mxu0 %v762
        %1054 = vmatpush.bf16.msra.mxu0 %v760
        %1055 = vmatmul.bf16.gmra.mxu0 %v339
        %v1056 = vpop.f32.mrf.mxu0
        %v1057 = vadd.f32 %v1044, %v1056
        %v1058 = vpop.f32.mrf.mxu0
        %1059 = vdwg.mxu0
        %1060 = vmatpush.bf16.msra.mxu0 %v790
        %1061 = vmatpush.bf16.msra.mxu0 %v788
        %1062 = vmatpush.bf16.msra.mxu0 %v786
        %1063 = vmatpush.bf16.msra.mxu0 %v784
        %1064 = vmatpush.bf16.msra.mxu0 %v782
        %1065 = vmatpush.bf16.msra.mxu0 %v780
        %1066 = vmatpush.bf16.msra.mxu0 %v778
        %1067 = vmatpush.bf16.msra.mxu0 %v776
        %1068 = vmatmul.bf16.gmra.mxu0 %v340
        %v1069 = vpop.f32.mrf.mxu0
        %v1070 = vadd.f32 %v1057, %v1069
        %v1071 = vpop.f32.mrf.mxu0
        %1072 = vdwg.mxu0
        %1073 = vmatpush.bf16.msra.mxu0 %v806
        %1074 = vmatpush.bf16.msra.mxu0 %v804
        %1075 = vmatpush.bf16.msra.mxu0 %v802
        %1076 = vmatpush.bf16.msra.mxu0 %v800
        %1077 = vmatpush.bf16.msra.mxu0 %v798
        %1078 = vmatpush.bf16.msra.mxu0 %v796
        %1079 = vmatpush.bf16.msra.mxu0 %v794
        %1080 = vmatpush.bf16.msra.mxu0 %v792
        %1081 = vmatmul.bf16.gmra.mxu0 %v341
        %v1082 = vpop.f32.mrf.mxu0
        %v1083 = vadd.f32 %v1070, %v1082
        %v1084 = vpop.f32.mrf.mxu0
        %1085 = vdwg.mxu0
        %1086 = vmatpush.bf16.msra.mxu0 %v822
        %1087 = vmatpush.bf16.msra.mxu0 %v820
        %1088 = vmatpush.bf16.msra.mxu0 %v818
        %1089 = vmatpush.bf16.msra.mxu0 %v816
        %1090 = vmatpush.bf16.msra.mxu0 %v814
        %1091 = vmatpush.bf16.msra.mxu0 %v812
        %1092 = vmatpush.bf16.msra.mxu0 %v810
        %1093 = vmatpush.bf16.msra.mxu0 %v808
        %1094 = vmatmul.bf16.gmra.mxu0 %v342
        %v1095 = vpop.f32.mrf.mxu0
        %v1096 = vadd.f32 %v1083, %v1095
        %v1097 = vpop.f32.mrf.mxu0
        %1098 = vdwg.mxu0
        %1099 = vmatpush.bf16.msra.mxu0 %v838
        %1100 = vmatpush.bf16.msra.mxu0 %v836
        %1101 = vmatpush.bf16.msra.mxu0 %v834
        %1102 = vmatpush.bf16.msra.mxu0 %v832
        %1103 = vmatpush.bf16.msra.mxu0 %v830
        %1104 = vmatpush.bf16.msra.mxu0 %v828
        %1105 = vmatpush.bf16.msra.mxu0 %v826
        %1106 = vmatpush.bf16.msra.mxu0 %v824
        %1107 = vmatmul.bf16.gmra.mxu0 %v343
        %v1108 = vpop.f32.mrf.mxu0
        %v1109 = vadd.f32 %v1096, %v1108
        %v1110 = vpop.f32.mrf.mxu0
        %1111 = vdwg.mxu0
        %1112 = vmatpush.bf16.msra.mxu0 0
        %1113 = vmatpush.bf16.msra.mxu0 0
        %1114 = vmatpush.bf16.msra.mxu0 0
        %1115 = vmatpush.bf16.msra.mxu0 0
        %1116 = vmatpush.bf16.msra.mxu0 0
        %1117 = vmatpush.bf16.msra.mxu0 0
        %1118 = vmatpush.bf16.msra.mxu0 0
        %1119 = vmatpush.bf16.msra.mxu0 %v840
        %1120 = vmatmul.bf16.gmra.mxu0 %v941
        %v1121 = vpop.f32.mrf.mxu0
        %v1122 = vadd.f32 %v1109, %v1121
        %v1123 = vpop.f32.mrf.mxu0
        %1124 = vdwg.mxu0
        %v1125 = vmax.f32 %v1031, 0.0
        %v1126 = vmax.f32 %v1122, 0.0
        %v1127 = vpack.c.bf16 %v1125, %v1125
        %v1128 = vpack.c.bf16 %v1126, %v1126
        %v1129 = vld [vmem:[#allocation7] sm:$0xf]
        %v1130 = vld [vmem:[#allocation7 + $0x4] sm:$0xf]
        %v1131 = vld [vmem:[#allocation7 + $0x8] sm:$0xf]
        %v1132 = vld [vmem:[#allocation7 + $0xc] sm:$0xf]
        %v1133 = vld [vmem:[#allocation7 + $0x10] sm:$0xf]
        %v1134 = vld [vmem:[#allocation7 + $0x14] sm:$0xf]
        %v1135 = vld [vmem:[#allocation7 + $0x18] sm:$0xf]
        %v1136 = vld [vmem:[#allocation7 + $0x1c] sm:$0xf]
        %v1137 = vld [vmem:[#allocation7 + $0x20] sm:$0xf]
        %v1138 = vld [vmem:[#allocation7 + $0x24] sm:$0xf]
        %v1139 = vld [vmem:[#allocation7 + $0x28] sm:$0xf]
        %v1140 = vld [vmem:[#allocation7 + $0x2c] sm:$0xf]
        %v1141 = vld [vmem:[#allocation7 + $0x30] sm:$0xf]
        %v1142 = vld [vmem:[#allocation7 + $0x34] sm:$0xf]
        %v1143 = vld [vmem:[#allocation7 + $0x38] sm:$0xf]
        %v1144 = vld [vmem:[#allocation7 + $0x3c] sm:$0xf]
        %v1145 = vld [vmem:[#allocation7 + $0x40] sm:$0xf]
        %v1146 = vld [vmem:[#allocation7 + $0x44] sm:$0xf]
        %v1147 = vld [vmem:[#allocation7 + $0x48] sm:$0xf]
        %v1148 = vld [vmem:[#allocation7 + $0x4c] sm:$0xf]
        %v1149 = vld [vmem:[#allocation7 + $0x50] sm:$0xf]
        %v1150 = vld [vmem:[#allocation7 + $0x54] sm:$0xf]
        %v1151 = vld [vmem:[#allocation7 + $0x58] sm:$0xf]
        %v1152 = vld [vmem:[#allocation7 + $0x5c] sm:$0xf]
        %v1153 = vld [vmem:[#allocation7 + $0x60] sm:$0xf]
        %v1154 = vld [vmem:[#allocation7 + $0x64] sm:$0xf]
        %v1155 = vld [vmem:[#allocation7 + $0x68] sm:$0xf]
        %v1156 = vld [vmem:[#allocation7 + $0x6c] sm:$0xf]
        %v1157 = vld [vmem:[#allocation7 + $0x70] sm:$0xf]
        %v1158 = vld [vmem:[#allocation7 + $0x74] sm:$0xf]
        %v1159 = vld [vmem:[#allocation7 + $0x78] sm:$0xf]
        %v1160 = vld [vmem:[#allocation7 + $0x7c] sm:$0xf]
        %v1161 = vld [vmem:[%s4] sm:$0x1]
        %v1163 = vperm.slane %v1161, 0
        %v1197 = vunpack.c.l.b16 %v1129
        %v1198 = vunpack.c.l.b16 %v1130
        %v1199 = vunpack.c.l.b16 %v1131
        %v1200 = vunpack.c.l.b16 %v1132
        %v1201 = vunpack.c.l.b16 %v1133
        %v1202 = vunpack.c.l.b16 %v1134
        %v1203 = vunpack.c.l.b16 %v1135
        %v1204 = vunpack.c.l.b16 %v1136
        %v1205 = vunpack.c.l.b16 %v1137
        %v1206 = vunpack.c.l.b16 %v1138
        %v1207 = vunpack.c.l.b16 %v1139
        %v1208 = vunpack.c.l.b16 %v1140
        %v1209 = vunpack.c.l.b16 %v1141
        %v1210 = vunpack.c.l.b16 %v1142
        %v1211 = vunpack.c.l.b16 %v1143
        %v1212 = vunpack.c.l.b16 %v1144
        %v1213 = vunpack.c.l.b16 %v1145
        %v1214 = vunpack.c.l.b16 %v1146
        %v1215 = vunpack.c.l.b16 %v1147
        %v1216 = vunpack.c.l.b16 %v1148
        %v1217 = vunpack.c.l.b16 %v1149
        %v1218 = vunpack.c.l.b16 %v1150
        %v1219 = vunpack.c.l.b16 %v1151
        %v1220 = vunpack.c.l.b16 %v1152
        %v1221 = vunpack.c.l.b16 %v1153
        %v1222 = vunpack.c.l.b16 %v1154
        %v1223 = vunpack.c.l.b16 %v1155
        %v1224 = vunpack.c.l.b16 %v1156
        %v1225 = vunpack.c.l.b16 %v1157
        %v1226 = vunpack.c.l.b16 %v1158
        %v1227 = vunpack.c.l.b16 %v1159
        %v1228 = vunpack.c.l.b16 %v1160
        %v1229 = vpack.c.b16 %v1198, %v1197
        %v1230 = vpack.c.b16 %v1200, %v1199
        %v1231 = vpack.c.b16 %v1202, %v1201
        %v1232 = vpack.c.b16 %v1204, %v1203
        %v1233 = vpack.c.b16 %v1206, %v1205
        %v1234 = vpack.c.b16 %v1208, %v1207
        %v1235 = vpack.c.b16 %v1210, %v1209
        %v1236 = vpack.c.b16 %v1212, %v1211
        %v1237 = vpack.c.b16 %v1214, %v1213
        %v1238 = vpack.c.b16 %v1216, %v1215
        %v1239 = vpack.c.b16 %v1218, %v1217
        %v1240 = vpack.c.b16 %v1220, %v1219
        %v1241 = vpack.c.b16 %v1222, %v1221
        %v1242 = vpack.c.b16 %v1224, %v1223
        %v1243 = vpack.c.b16 %v1226, %v1225
        %v1244 = vpack.c.b16 %v1228, %v1227
        %1261 = vmatpush.bf16.msra.mxu0 %v1236
        %1262 = vmatpush.bf16.msra.mxu0 %v1235
        %1263 = vmatpush.bf16.msra.mxu0 %v1234
        %1264 = vmatpush.bf16.msra.mxu0 %v1233
        %1265 = vmatpush.bf16.msra.mxu0 %v1232
        %1266 = vmatpush.bf16.msra.mxu0 %v1231
        %1267 = vmatpush.bf16.msra.mxu0 %v1230
        %1268 = vmatpush.bf16.msra.mxu0 %v1229
        %1269 = vmatmul.bf16.gmra.mxu0 %v1127
        %v1270 = vpop.f32.mrf.mxu0
        %v1271 = vadd.f32 %v1163, %v1270
        %v1272 = vpop.f32.mrf.mxu0
        %1273 = vdwg.mxu0
        %1274 = vmatpush.bf16.msra.mxu0 %v1244
        %1275 = vmatpush.bf16.msra.mxu0 %v1243
        %1276 = vmatpush.bf16.msra.mxu0 %v1242
        %1277 = vmatpush.bf16.msra.mxu0 %v1241
        %1278 = vmatpush.bf16.msra.mxu0 %v1240
        %1279 = vmatpush.bf16.msra.mxu0 %v1239
        %1280 = vmatpush.bf16.msra.mxu0 %v1238
        %1281 = vmatpush.bf16.msra.mxu0 %v1237
        %1282 = vmatmul.bf16.gmra.mxu0 %v1128
        %v1283 = vpop.f32.mrf.mxu0
        %v1284 = vadd.f32 %v1271, %v1283
        %v1285 = vpop.f32.mrf.mxu0
        %1286 = vdwg.mxu0
        %v1287 = vmax.f32 %v1284, 0.0
        %v1288 = vpack.c.bf16 %v1287, %v1287
        %v1289 = vld [vmem:[%s5] sm:$0xf]
        %v1290 = vld [vmem:[%s5 + $0x4] sm:$0xf]
        %v1291 = vld [vmem:[%s5 + $0x8] sm:$0xf]
        %v1292 = vld [vmem:[%s5 + $0xc] sm:$0xf]
        %v1293 = vld [vmem:[%s5 + $0x10] sm:$0xf]
        %v1294 = vld [vmem:[%s5 + $0x14] sm:$0xf]
        %v1295 = vld [vmem:[%s5 + $0x18] sm:$0xf]
        %v1296 = vld [vmem:[%s5 + $0x1c] sm:$0xf]
        %v1297 = vld [vmem:[%s5 + $0x20] sm:$0xf]
        %v1298 = vld [vmem:[%s5 + $0x24] sm:$0xf]
        %v1299 = vld [vmem:[%s5 + $0x28] sm:$0xf]
        %v1300 = vld [vmem:[%s5 + $0x2c] sm:$0xf]
        %v1301 = vld [vmem:[%s5 + $0x30] sm:$0xf]
        %v1302 = vld [vmem:[%s5 + $0x34] sm:$0xf]
        %v1303 = vld [vmem:[%s5 + $0x38] sm:$0xf]
        %v1304 = vld [vmem:[%s5 + $0x3c] sm:$0xf]
        %v1305 = vld [vmem:[%s6] sm:$0x1]
        %v1307 = vperm.slane %v1305, 0
        %v1325 = vunpack.c.l.b16 %v1289
        %v1326 = vunpack.c.l.b16 %v1290
        %v1327 = vunpack.c.l.b16 %v1291
        %v1328 = vunpack.c.l.b16 %v1292
        %v1329 = vunpack.c.l.b16 %v1293
        %v1330 = vunpack.c.l.b16 %v1294
        %v1331 = vunpack.c.l.b16 %v1295
        %v1332 = vunpack.c.l.b16 %v1296
        %v1333 = vunpack.c.l.b16 %v1297
        %v1334 = vunpack.c.l.b16 %v1298
        %v1335 = vunpack.c.l.b16 %v1299
        %v1336 = vunpack.c.l.b16 %v1300
        %v1337 = vunpack.c.l.b16 %v1301
        %v1338 = vunpack.c.l.b16 %v1302
        %v1339 = vunpack.c.l.b16 %v1303
        %v1340 = vunpack.c.l.b16 %v1304
        %v1341 = vpack.c.b16 %v1326, %v1325
        %v1342 = vpack.c.b16 %v1328, %v1327
        %v1343 = vpack.c.b16 %v1330, %v1329
        %v1344 = vpack.c.b16 %v1332, %v1331
        %v1345 = vpack.c.b16 %v1334, %v1333
        %v1346 = vpack.c.b16 %v1336, %v1335
        %v1347 = vpack.c.b16 %v1338, %v1337
        %v1348 = vpack.c.b16 %v1340, %v1339
        %1357 = vmatpush.bf16.msra.mxu0 %v1348
        %1358 = vmatpush.bf16.msra.mxu0 %v1347
        %1359 = vmatpush.bf16.msra.mxu0 %v1346
        %1360 = vmatpush.bf16.msra.mxu0 %v1345
        %1361 = vmatpush.bf16.msra.mxu0 %v1344
        %1362 = vmatpush.bf16.msra.mxu0 %v1343
        %1363 = vmatpush.bf16.msra.mxu0 %v1342
        %1364 = vmatpush.bf16.msra.mxu0 %v1341
        %1365 = vmatmul.bf16.gmra.mxu0 %v1288
        %v1366 = vpop.f32.mrf.mxu0
        %v1367 = vadd.f32 %v1307, %v1366
        %v1368 = vpop.f32.mrf.mxu0
        %1369 = vdwg.mxu0
        %v1370 = vxor.u32 %v1367, 2147483648
        %v1371 = vmul.f32 %v1370, 1.442695
        %v1372 = vpow.pop %v1371
        %v1373 = vadd.f32 %v1372, 1.0
        %v1374 = vrcp.pop %v1373
        %v1375 = vmul.f32 %v1373, %v1374
        %v1376 = vsub.f32 1.0, %v1375
        %v1377 = vmul.f32 %v1374, %v1376
        %v1378 = vadd.f32 %v1374, %v1377
        %vm1379 = vweird.f32 %v1373
        %vm1380 = vweird.f32 %v1374
        %vm1381 = vmor %vm1379, %vm1380
        %v1382 = vsel %vm1381, %v1374, %v1378
        %v1383 = vand.u32 2147483647, %v1373
        %vm1384 = vcmp.eq.f32.partialorder %v1383, 8.507059e+37
        %v1385 = vand.u32 %v1373, 2147483648
        %v1386 = vor.u32 1.1754944e-38, %v1385
        %v1387 = vsel %vm1384, %v1386, %v1382
        %v1388 = vmul.f32 1.0, %v1387
        %vm1389 = vcmask 80896
        %1390 = vst.msk [vmem:[%s329] sm:$0xff] %vm1389, %v1388
        %s1391 = sand.u32 %s185, 1
        %s1392 = scalar_lea.sflag [#allocation4], %s1391
        %s1393 = sand.u32 %s185, 1
        %s1394 = smul.addr %s1393, 8
        %s1395 = scalar_lea.vmem [#allocation8], %s1394
        // Predicated region
        $region61: #{mnist_net_forward.1} parent=47 // pred_check
          %p1396 = pneg %p195
        $region62: #{mnist_net_forward.1} parent=47 // pred_check_branch
          %1398 = sbr.rel (%p1396) target = $region64
        $region63: #{mnist_net_forward.1} parent=47 // pred_region
          %1400 = vsyncadd %s1392, 0
          %s1401 = smul.addr %s25, 8
          %s1402 = scalar_lea.hbm %s7, %s1401
          %s1404 = sshll.u32 %s1395, 4
          %s1405 = int_to_ptr.vmem [resolvable:$true] %s1404
          %s1406 = sshll.u32 %s1402, 4
          %s1407 = int_to_ptr.hbm [resolvable:$true] %s1406
          %1409 = dma.vmem_to_hbm [thread:$0]  %s1405, 128, %s1407, %s1392
        $region64: #{mnist_net_forward.1} parent=47 // pred_fallthru
          _
      $region48: #{mnist_net_forward.1} parent=5 // pred_fallthru
        _
      %p1410 = scmp.le.s32.totalorder 2, %s20
      // Predicated region
      $region65: #{mnist_net_forward.1} parent=5 // pred_check
        %p1411 = pneg %p1410
      $region66: #{mnist_net_forward.1} parent=5 // pred_check_branch
        %1413 = sbr.rel (%p1411) target = $region68
      $region67: #{mnist_net_forward.1} parent=5 // pred_region
        %s1414 = ssub.s32 %s20, 2
        // Predicated region
        $region69: #{mnist_net_forward.1} parent=67 // pred_check
          %p1415 = pneg %p201
        $region70: #{mnist_net_forward.1} parent=67 // pred_check_branch
          %1417 = sbr.rel (%p1415) target = $region72
        $region71: #{mnist_net_forward.1} parent=67 // pred_region
          %s1418 = sand.u32 %s186, 1
          %s1419 = scalar_lea.sflag [#allocation4], %s1418
          %s1420 = sand.u32 %s186, 1
          %s1421 = smul.addr %s1420, 8
          %s1422 = scalar_lea.vmem [#allocation8], %s1421
          %1424 = dma.done %s1419, 128
        $region72: #{mnist_net_forward.1} parent=67 // pred_fallthru
          _
      $region68: #{mnist_net_forward.1} parent=5 // pred_fallthru
        _
    $region6: #{mnist_net_forward.1} parent=1 // loop_footer
      %s24 = sadd.s32 1, %s20
    $region7: #{mnist_net_forward.1} parent=1 // loop_footer_branch
      %19 = sbr.rel target = $region3
    $region8: #{mnist_net_forward.1} parent=1 // loop_exit
      _
    %1425 = vsyncpa [#allocation3], 1
    %s1426 = scalar_lea.sflag [#allocation3], 1
    %1427 = vsyncpa %s1426, 1
    %1428 = vsyncpa [#allocation6], 1
    %1429 = vsyncpa [#allocation4], 1
    %s1430 = scalar_lea.sflag [#allocation4], 1
    %1431 = vsyncpa %s1430, 1

</llo_original>
